<compile_context>
chip_gen: v7x
topology: tpu7x:2x2x1
jax: 0.10.0
libtpu: 0.0.40
codegen_flags: <defaults>
</compile_context>

<pallas_src>
import functools
import math

import jax
import jax.numpy as jnp
from jax.experimental import pallas as pl
from jax.experimental.pallas import tpu as pltpu

# ---------------- module config ----------------
D_MODEL = 32
NUM_HEADS = 4
D_FF = 64
SEQ = 8
BATCH = 2
LN_EPS = 1e-5
NEG_INF = -1e9          # additive mask; exp(NEG_INF - rowmax) underflows to exactly 0.0 in f32

HEAD_DIM = D_MODEL // NUM_HEADS
N_TOK = BATCH * SEQ              # 16 flattened tokens
C_COL = NUM_HEADS * N_TOK        # 64 head-major score columns

# packed weight-slab lane offsets (each segment starts on a 128-lane tile boundary)
W_QKV, W_WO, W_W1, W_W2 = 0, 128, 256, 384
W_LANES = 512
# packed constant-slab row offsets
R_BQKV, R_BO, R_B1, R_B2 = 0, 1, 2, 3
R_LN1G, R_LN1B, R_LN2G, R_LN2B = 4, 5, 6, 7
R_HMASK = 8                      # head_mask rows  [8, 8+C_COL)
R_BBIAS = R_HMASK + C_COL        # batch_bias rows [72, 72+N_TOK)
C_ROWS = R_BBIAS + N_TOK         # 88  (multiple of 8)
C_LANES = 128


def _layernorm(x, gamma, beta):
    mu = jnp.mean(x, axis=-1, keepdims=True)
    xc = x - mu
    var = jnp.mean(xc * xc, axis=-1, keepdims=True)
    return xc * jax.lax.rsqrt(var + LN_EPS) * gamma + beta


def _erf(z):
    # Abramowitz & Stegun 7.1.26, max abs error ~1.5e-7.  Uses only exp/mul/add/div/select.
    a1, a2, a3, a4, a5 = 0.254829592, -0.284496736, 1.421413741, -1.453152027, 1.061405429
    az = jnp.abs(z)
    t = 1.0 / (1.0 + 0.3275911 * az)
    poly = ((((a5 * t + a4) * t + a3) * t + a2) * t + a1) * t
    e = 1.0 - poly * jnp.exp(-az * az)
    return jnp.where(z < 0.0, -e, e)


def _gelu_exact(x):
    # Matches nn.GELU() (approximate='none') to ~1e-6.
    return 0.5 * x * (1.0 + _erf(x * (1.0 / math.sqrt(2.0))))


def transformer_block_kernel(x_ref, w_ref, c_ref, o_ref, *, num_heads):
    x = x_ref[...]                      # (N, D) f32
    N, D = x.shape
    C = num_heads * N

    # ---- static views into the two packed slabs (single DMA each, no per-param transfers) ----
    wqkv = w_ref[:, W_QKV:W_QKV + 3 * D]      # (D, 3D)  Q cols pre-scaled by 1/sqrt(head_dim)
    wo = w_ref[:, W_WO:W_WO + D]              # (D, D)
    w1 = w_ref[:, W_W1:W_W1 + D_FF]           # (D, D_FF)
    w2p = w_ref[:, W_W2:W_W2 + D_FF]          # (D, D_FF) PyTorch-layout ff2 weight

    bqkv = c_ref[R_BQKV:R_BQKV + 1, 0:3 * D]
    bo = c_ref[R_BO:R_BO + 1, 0:D]
    b1 = c_ref[R_B1:R_B1 + 1, 0:D_FF]
    b2 = c_ref[R_B2:R_B2 + 1, 0:D]
    ln1_g = c_ref[R_LN1G:R_LN1G + 1, 0:D]
    ln1_b = c_ref[R_LN1B:R_LN1B + 1, 0:D]
    ln2_g = c_ref[R_LN2G:R_LN2G + 1, 0:D]
    ln2_b = c_ref[R_LN2B:R_LN2B + 1, 0:D]
    head_mask = c_ref[R_HMASK:R_HMASK + C, 0:D]        # (C, D) precomputed host-side
    batch_bias = c_ref[R_BBIAS:R_BBIAS + N, 0:C]       # (N, C) precomputed host-side

    # ---- fused QKV projection (scale already folded into Q weight/bias columns) ----
    qkv = jnp.dot(x, wqkv, preferred_element_type=jnp.float32) + bqkv      # (N, 3D)
    q = qkv[:, :D]
    k = qkv[:, D:2 * D]
    v = qkv[:, 2 * D:]

    # ---- all-head / all-batch attention via block-diagonal masks (no per-head loop) ----
    # kbig first; vbig is deferred until after s/p so kbig is dead before vbig is live.
    kbig = jnp.tile(k, (num_heads, 1)) * head_mask                         # (C, D)
    s = jax.lax.dot_general(q, kbig, (((1,), (1,)), ((), ())),
                            preferred_element_type=jnp.float32) + batch_bias  # (N, C)
    # Global row-max (not per-head): the factor cancels exactly in num/den; it would only
    # matter if one head's scores sat ~88+ below the global row max (f32 exp underflow),
    # which cannot happen at these magnitudes.
    s = s - jnp.max(s, axis=-1, keepdims=True)
    # Masked (other-sequence) columns are ~-1e9 -> exp underflows to exactly 0.0; each head's
    # denominator stays > 0 because same-sequence keys are never masked.
    p = jnp.exp(s)                                                         # (N, C)

    vbig = jnp.tile(v, (num_heads, 1)) * head_mask                         # (C, D)
    # Fused numerator/denominator: a single MXU matmul instead of two.
    rhs = jnp.concatenate([vbig, head_mask], axis=1)                       # (C, 2D)
    nd = jnp.dot(p, rhs, preferred_element_type=jnp.float32)               # (N, 2D)
    attn = nd[:, :D] / nd[:, D:]                                           # per-head softmax
    attn = jnp.dot(attn, wo, preferred_element_type=jnp.float32) + bo

    # ---- residual + LayerNorm 1 ----
    y = _layernorm(x + attn, ln1_g, ln1_b)

    # ---- feed-forward: Linear -> GELU(exact) -> Linear (dropout = identity in eval) ----
    h = jnp.dot(y, w1, preferred_element_type=jnp.float32) + b1
    h = _gelu_exact(h)
    # ff2 as h @ W2^T: contract axis 1 of both operands, PyTorch-layout weight used as-is.
    ff = jax.lax.dot_general(h, w2p, (((1,), (1,)), ((), ())),
                             preferred_element_type=jnp.float32) + b2

    # ---- residual + LayerNorm 2 ----
    o_ref[...] = _layernorm(y + ff, ln2_g, ln2_b)


@jax.jit
def transformer_block(x, wslab, cslab):
    """x: (B, S, D) float32.  wslab/cslab: packed parameter slabs from prep_params."""
    B, S, D = x.shape
    x2d = x.reshape(B * S, D)
    vmem = pl.BlockSpec(memory_space=pltpu.MemorySpace.VMEM)
    out2d = pl.pallas_call(
        functools.partial(transformer_block_kernel, num_heads=NUM_HEADS),
        out_shape=jax.ShapeDtypeStruct((B * S, D), jnp.float32),
        in_specs=[vmem, vmem, vmem],
        out_specs=vmem,
    )(x2d, wslab, cslab)
    return out2d.reshape(B, S, D)


def init_params(key):
    """Deterministic synthetic init matching the PyTorch module's parameter shapes/layout."""
    ks = jax.random.split(key, 6)

    def u(k, shape, fan_in):
        bound = 1.0 / math.sqrt(fan_in)
        return jax.random.uniform(k, shape, jnp.float32, -bound, bound)

    return {
        # nn.MultiheadAttention packed projections (PyTorch layout: (out, in))
        "in_proj_w":  u(ks[0], (3 * D_MODEL, D_MODEL), D_MODEL),
        "in_proj_b":  jnp.zeros((1, 3 * D_MODEL), jnp.float32),
        "out_proj_w": u(ks[1], (D_MODEL, D_MODEL), D_MODEL),
        "out_proj_b": jnp.zeros((1, D_MODEL), jnp.float32),
        # feed-forward
        "ff1_w": u(ks[2], (D_FF, D_MODEL), D_MODEL),
        "ff1_b": u(ks[3], (1, D_FF), D_MODEL),
        "ff2_w": u(ks[4], (D_MODEL, D_FF), D_FF),
        "ff2_b": u(ks[5], (1, D_MODEL), D_FF),
        # LayerNorms (PyTorch default init)
        "ln1_g": jnp.ones((1, D_MODEL), jnp.float32),
        "ln1_b": jnp.zeros((1, D_MODEL), jnp.float32),
        "ln2_g": jnp.ones((1, D_MODEL), jnp.float32),
        "ln2_b": jnp.zeros((1, D_MODEL), jnp.float32),
    }


def prep_params(p):
    """One-time host-side transform: transpose/scale weights and pack everything into
    two lane-dense f32 slabs (plus the compile-time-constant attention masks)."""
    scale = 1.0 / math.sqrt(HEAD_DIM)
    col_scale = jnp.concatenate(
        [jnp.full((D_MODEL,), scale, jnp.float32), jnp.ones((2 * D_MODEL,), jnp.float32)]
    )
    wqkv = p["in_proj_w"].T * col_scale[None, :]     # (D, 3D), Q cols pre-scaled
    bqkv = p["in_proj_b"] * col_scale[None, :]       # (1, 3D)

    wslab = jnp.zeros((D_MODEL, W_LANES), jnp.float32)
    wslab = wslab.at[:, W_QKV:W_QKV + 3 * D_MODEL].set(wqkv)
    wslab = wslab.at[:, W_WO:W_WO + D_MODEL].set(p["out_proj_w"].T)
    wslab = wslab.at[:, W_W1:W_W1 + D_FF].set(p["ff1_w"].T)
    wslab = wslab.at[:, W_W2:W_W2 + D_FF].set(p["ff2_w"])       # PyTorch layout, used as W2^T

    # head_mask[c, d] = 1 iff column-group head (c // N) owns feature d (d // head_dim)
    hm_r = jnp.arange(C_COL)[:, None]
    hm_c = jnp.arange(D_MODEL)[None, :]
    head_mask = (hm_r // N_TOK == hm_c // HEAD_DIM).astype(jnp.float32)        # (C, D)
    # batch_bias[r, c] = 0 if query token r and key token (c % N) are in the same sequence
    bb_r = jnp.arange(N_TOK)[:, None]
    bb_c = jnp.arange(C_COL)[None, :]
    batch_bias = jnp.where(bb_r // SEQ == (bb_c % N_TOK) // SEQ, 0.0, NEG_INF)  # (N, C)
    batch_bias = batch_bias.astype(jnp.float32)

    cslab = jnp.zeros((C_ROWS, C_LANES), jnp.float32)
    cslab = cslab.at[R_BQKV, 0:3 * D_MODEL].set(bqkv[0])
    cslab = cslab.at[R_BO, 0:D_MODEL].set(p["out_proj_b"][0])
    cslab = cslab.at[R_B1, 0:D_FF].set(p["ff1_b"][0])
    cslab = cslab.at[R_B2, 0:D_MODEL].set(p["ff2_b"][0])
    cslab = cslab.at[R_LN1G, 0:D_MODEL].set(p["ln1_g"][0])
    cslab = cslab.at[R_LN1B, 0:D_MODEL].set(p["ln1_b"][0])
    cslab = cslab.at[R_LN2G, 0:D_MODEL].set(p["ln2_g"][0])
    cslab = cslab.at[R_LN2B, 0:D_MODEL].set(p["ln2_b"][0])
    cslab = cslab.at[R_HMASK:R_HMASK + C_COL, 0:D_MODEL].set(head_mask)
    cslab = cslab.at[R_BBIAS:R_BBIAS + N_TOK, 0:C_COL].set(batch_bias)
    return {"wslab": wslab, "cslab": cslab}


def reference_block(x, p):
    """Pure-JAX reference matching PyTorch eval-mode semantics (original param layout)."""
    B, S, D = x.shape
    hd = D // NUM_HEADS
    scale = 1.0 / math.sqrt(hd)

    def ln(v, g, b):
        mu = jnp.mean(v, -1, keepdims=True)
        var = jnp.mean((v - mu) ** 2, -1, keepdims=True)
        return (v - mu) * jax.lax.rsqrt(var + LN_EPS) * g + b

    qkv = x @ p["in_proj_w"].T + p["in_proj_b"][0]
    q, k, v = qkv[..., :D], qkv[..., D:2 * D], qkv[..., 2 * D:]
    q = q.reshape(B, S, NUM_HEADS, hd).transpose(0, 2, 1, 3)
    k = k.reshape(B, S, NUM_HEADS, hd).transpose(0, 2, 1, 3)
    v = v.reshape(B, S, NUM_HEADS, hd).transpose(0, 2, 1, 3)
    s = jnp.einsum("bhqd,bhkd->bhqk", q * scale, k)
    a = jax.nn.softmax(s, axis=-1)
    o = jnp.einsum("bhqk,bhkd->bhqd", a, v).transpose(0, 2, 1, 3).reshape(B, S, D)
    attn = o @ p["out_proj_w"].T + p["out_proj_b"][0]
    y = ln(x + attn, p["ln1_g"][0], p["ln1_b"][0])
    h = jax.nn.gelu(y @ p["ff1_w"].T + p["ff1_b"][0], approximate=False)
    ff = h @ p["ff2_w"].T + p["ff2_b"][0]
    return ln(y + ff, p["ln2_g"][0], p["ln2_b"][0])


if __name__ == "__main__":
    key = jax.random.PRNGKey(0)
    k_x, k_p = jax.random.split(key)
    x = jax.random.normal(k_x, (BATCH, SEQ, D_MODEL), jnp.float32)
    params = init_params(k_p)
    kparams = prep_params(params)        # one-time host-side packing

    out = transformer_block(x, kparams["wslab"], kparams["cslab"])
    out = jax.block_until_ready(out)

    ref = reference_block(x, params)
    assert out.shape == (BATCH, SEQ, D_MODEL)
    assert jnp.allclose(out, ref, rtol=1e-4, atol=1e-4), "mismatch vs reference"
    print("KERNEL_OK")
</pallas_src>

<mosaic_0001>
module attributes {stable_mosaic.version = 11 : i64} {
  func.func @transformer_block_kernel(%arg0: memref<16x32xf32, #tpu.memory_space<vmem>>, %arg1: memref<32x512xf32, #tpu.memory_space<vmem>>, %arg2: memref<88x128xf32, #tpu.memory_space<vmem>>, %arg3: memref<16x32xf32, #tpu.memory_space<vmem>>) attributes {dimension_semantics = [], scalar_prefetch = 0 : i64, scratch_operands = 0 : i64, tpu.core_type = #tpu.core_type<tc>} {
    %c0 = arith.constant 0 : index
    %c0_0 = arith.constant 0 : index
    %0 = vector.load %arg0[%c0, %c0_0] : memref<16x32xf32, #tpu.memory_space<vmem>>, vector<16x32xf32>
    %c0_1 = arith.constant 0 : index
    %c0_2 = arith.constant 0 : index
    %1 = vector.load %arg1[%c0_1, %c0_2] : memref<32x512xf32, #tpu.memory_space<vmem>>, vector<32x96xf32>
    %c0_3 = arith.constant 0 : index
    %c128 = arith.constant 128 : index
    %2 = vector.load %arg1[%c0_3, %c128] : memref<32x512xf32, #tpu.memory_space<vmem>>, vector<32x32xf32>
    %c0_4 = arith.constant 0 : index
    %c256 = arith.constant 256 : index
    %3 = vector.load %arg1[%c0_4, %c256] : memref<32x512xf32, #tpu.memory_space<vmem>>, vector<32x64xf32>
    %c0_5 = arith.constant 0 : index
    %c384 = arith.constant 384 : index
    %4 = vector.load %arg1[%c0_5, %c384] : memref<32x512xf32, #tpu.memory_space<vmem>>, vector<32x64xf32>
    %c0_6 = arith.constant 0 : index
    %c0_7 = arith.constant 0 : index
    %5 = vector.load %arg2[%c0_6, %c0_7] : memref<88x128xf32, #tpu.memory_space<vmem>>, vector<1x96xf32>
    %c1 = arith.constant 1 : index
    %c0_8 = arith.constant 0 : index
    %6 = vector.load %arg2[%c1, %c0_8] : memref<88x128xf32, #tpu.memory_space<vmem>>, vector<1x32xf32>
    %c2 = arith.constant 2 : index
    %c0_9 = arith.constant 0 : index
    %7 = vector.load %arg2[%c2, %c0_9] : memref<88x128xf32, #tpu.memory_space<vmem>>, vector<1x64xf32>
    %c3 = arith.constant 3 : index
    %c0_10 = arith.constant 0 : index
    %8 = vector.load %arg2[%c3, %c0_10] : memref<88x128xf32, #tpu.memory_space<vmem>>, vector<1x32xf32>
    %c4 = arith.constant 4 : index
    %c0_11 = arith.constant 0 : index
    %9 = vector.load %arg2[%c4, %c0_11] : memref<88x128xf32, #tpu.memory_space<vmem>>, vector<1x32xf32>
    %c5 = arith.constant 5 : index
    %c0_12 = arith.constant 0 : index
    %10 = vector.load %arg2[%c5, %c0_12] : memref<88x128xf32, #tpu.memory_space<vmem>>, vector<1x32xf32>
    %c6 = arith.constant 6 : index
    %c0_13 = arith.constant 0 : index
    %11 = vector.load %arg2[%c6, %c0_13] : memref<88x128xf32, #tpu.memory_space<vmem>>, vector<1x32xf32>
    %c7 = arith.constant 7 : index
    %c0_14 = arith.constant 0 : index
    %12 = vector.load %arg2[%c7, %c0_14] : memref<88x128xf32, #tpu.memory_space<vmem>>, vector<1x32xf32>
    %c8 = arith.constant 8 : index
    %c0_15 = arith.constant 0 : index
    %13 = vector.load %arg2[%c8, %c0_15] : memref<88x128xf32, #tpu.memory_space<vmem>>, vector<64x32xf32>
    %c72 = arith.constant 72 : index
    %c0_16 = arith.constant 0 : index
    %14 = vector.load %arg2[%c72, %c0_16] : memref<88x128xf32, #tpu.memory_space<vmem>>, vector<16x64xf32>
    %cst = arith.constant dense<0.000000e+00> : vector<16x96xf32>
    %15 = tpu.matmul %0, %1, %cst {dimension_numbers = #tpu.dot_dimension_numbers<[1], [0], [0], [1], [0, 0, 1, 1], [], []>} : vector<16x32xf32>, vector<32x96xf32>, vector<16x96xf32> -> vector<16x96xf32>
    %16 = vector.broadcast %5 : vector<1x96xf32> to vector<16x96xf32>
    %17 = arith.addf %15, %16 : vector<16x96xf32>
    %18 = vector.extract_strided_slice %17 {offsets = [0, 0], sizes = [16, 32], strides = [1, 1]} : vector<16x96xf32> to vector<16x32xf32>
    %19 = vector.extract_strided_slice %17 {offsets = [0, 32], sizes = [16, 32], strides = [1, 1]} : vector<16x96xf32> to vector<16x32xf32>
    %20 = vector.extract_strided_slice %17 {offsets = [0, 64], sizes = [16, 32], strides = [1, 1]} : vector<16x96xf32> to vector<16x32xf32>
    %21 = tpu.concatenate %19, %19, %19, %19 in 0 : vector<16x32xf32>, vector<16x32xf32>, vector<16x32xf32>, vector<16x32xf32> -> vector<64x32xf32>
    %22 = arith.mulf %21, %13 : vector<64x32xf32>
    %cst_17 = arith.constant dense<0.000000e+00> : vector<16x64xf32>
    %23 = tpu.matmul %18, %22, %cst_17 {dimension_numbers = #tpu.dot_dimension_numbers<[1], [1], [0], [0], [0, 0, 1, 0], [], []>} : vector<16x32xf32>, vector<64x32xf32>, vector<16x64xf32> -> vector<16x64xf32>
    %24 = arith.addf %23, %14 : vector<16x64xf32>
    %cst_18 = arith.constant dense<0xFF800000> : vector<16xf32>
    %25 = vector.multi_reduction <maximumf>, %24, %cst_18 [1] : vector<16x64xf32> to vector<16xf32>
    %26 = vector.shape_cast %25 : vector<16xf32> to vector<16x1xf32>
    %27 = vector.broadcast %26 : vector<16x1xf32> to vector<16x64xf32>
    %28 = arith.subf %24, %27 : vector<16x64xf32>
    %29 = math.exp %28 : vector<16x64xf32>
    %30 = tpu.concatenate %20, %20, %20, %20 in 0 : vector<16x32xf32>, vector<16x32xf32>, vector<16x32xf32>, vector<16x32xf32> -> vector<64x32xf32>
    %31 = arith.mulf %30, %13 : vector<64x32xf32>
    %32 = tpu.concatenate %31, %13 in 1 : vector<64x32xf32>, vector<64x32xf32> -> vector<64x64xf32>
    %cst_19 = arith.constant dense<0.000000e+00> : vector<16x64xf32>
    %33 = tpu.matmul %29, %32, %cst_19 {dimension_numbers = #tpu.dot_dimension_numbers<[1], [0], [0], [1], [0, 0, 1, 1], [], []>} : vector<16x64xf32>, vector<64x64xf32>, vector<16x64xf32> -> vector<16x64xf32>
    %34 = vector.extract_strided_slice %33 {offsets = [0, 0], sizes = [16, 32], strides = [1, 1]} : vector<16x64xf32> to vector<16x32xf32>
    %35 = vector.extract_strided_slice %33 {offsets = [0, 32], sizes = [16, 32], strides = [1, 1]} : vector<16x64xf32> to vector<16x32xf32>
    %36 = arith.divf %34, %35 : vector<16x32xf32>
    %cst_20 = arith.constant dense<0.000000e+00> : vector<16x32xf32>
    %37 = tpu.matmul %36, %2, %cst_20 {dimension_numbers = #tpu.dot_dimension_numbers<[1], [0], [0], [1], [0, 0, 1, 1], [], []>} : vector<16x32xf32>, vector<32x32xf32>, vector<16x32xf32> -> vector<16x32xf32>
    %38 = vector.broadcast %6 : vector<1x32xf32> to vector<16x32xf32>
    %39 = arith.addf %37, %38 : vector<16x32xf32>
    %40 = arith.addf %0, %39 : vector<16x32xf32>
    %cst_21 = arith.constant dense<0.000000e+00> : vector<16xf32>
    %41 = vector.multi_reduction <add>, %40, %cst_21 [1] : vector<16x32xf32> to vector<16xf32>
    %42 = vector.shape_cast %41 : vector<16xf32> to vector<16x1xf32>
    %cst_22 = arith.constant 3.200000e+01 : f32
    %43 = vector.broadcast %cst_22 : f32 to vector<16x1xf32>
    %44 = arith.divf %42, %43 : vector<16x1xf32>
    %45 = vector.broadcast %44 : vector<16x1xf32> to vector<16x32xf32>
    %46 = arith.subf %40, %45 : vector<16x32xf32>
    %47 = arith.mulf %46, %46 : vector<16x32xf32>
    %cst_23 = arith.constant dense<0.000000e+00> : vector<16xf32>
    %48 = vector.multi_reduction <add>, %47, %cst_23 [1] : vector<16x32xf32> to vector<16xf32>
    %49 = vector.shape_cast %48 : vector<16xf32> to vector<16x1xf32>
    %cst_24 = arith.constant 3.200000e+01 : f32
    %50 = vector.broadcast %cst_24 : f32 to vector<16x1xf32>
    %51 = arith.divf %49, %50 : vector<16x1xf32>
    %cst_25 = arith.constant 9.99999974E-6 : f32
    %52 = vector.broadcast %cst_25 : f32 to vector<16x1xf32>
    %53 = arith.addf %51, %52 : vector<16x1xf32>
    %54 = math.rsqrt %53 : vector<16x1xf32>
    %55 = vector.broadcast %54 : vector<16x1xf32> to vector<16x32xf32>
    %56 = arith.mulf %46, %55 : vector<16x32xf32>
    %57 = vector.broadcast %9 : vector<1x32xf32> to vector<16x32xf32>
    %58 = arith.mulf %56, %57 : vector<16x32xf32>
    %59 = vector.broadcast %10 : vector<1x32xf32> to vector<16x32xf32>
    %60 = arith.addf %58, %59 : vector<16x32xf32>
    %cst_26 = arith.constant dense<0.000000e+00> : vector<16x64xf32>
    %61 = tpu.matmul %60, %3, %cst_26 {dimension_numbers = #tpu.dot_dimension_numbers<[1], [0], [0], [1], [0, 0, 1, 1], [], []>} : vector<16x32xf32>, vector<32x64xf32>, vector<16x64xf32> -> vector<16x64xf32>
    %62 = vector.broadcast %7 : vector<1x64xf32> to vector<16x64xf32>
    %63 = arith.addf %61, %62 : vector<16x64xf32>
    %cst_27 = arith.constant 5.000000e-01 : f32
    %64 = vector.broadcast %cst_27 : f32 to vector<16x64xf32>
    %65 = arith.mulf %64, %63 : vector<16x64xf32>
    %cst_28 = arith.constant 0.707106769 : f32
    %66 = vector.broadcast %cst_28 : f32 to vector<16x64xf32>
    %67 = arith.mulf %63, %66 : vector<16x64xf32>
    %68 = math.absf %67 : vector<16x64xf32>
    %cst_29 = arith.constant 0.327591091 : f32
    %69 = vector.broadcast %cst_29 : f32 to vector<16x64xf32>
    %70 = arith.mulf %69, %68 : vector<16x64xf32>
    %cst_30 = arith.constant 1.000000e+00 : f32
    %71 = vector.broadcast %cst_30 : f32 to vector<16x64xf32>
    %72 = arith.addf %71, %70 : vector<16x64xf32>
    %cst_31 = arith.constant 1.000000e+00 : f32
    %73 = vector.broadcast %cst_31 : f32 to vector<16x64xf32>
    %74 = arith.divf %73, %72 : vector<16x64xf32>
    %cst_32 = arith.constant 1.06140542 : f32
    %75 = vector.broadcast %cst_32 : f32 to vector<16x64xf32>
    %76 = arith.mulf %75, %74 : vector<16x64xf32>
    %cst_33 = arith.constant -1.45315206 : f32
    %77 = vector.broadcast %cst_33 : f32 to vector<16x64xf32>
    %78 = arith.addf %76, %77 : vector<16x64xf32>
    %79 = arith.mulf %78, %74 : vector<16x64xf32>
    %cst_34 = arith.constant 1.42141378 : f32
    %80 = vector.broadcast %cst_34 : f32 to vector<16x64xf32>
    %81 = arith.addf %79, %80 : vector<16x64xf32>
    %82 = arith.mulf %81, %74 : vector<16x64xf32>
    %cst_35 = arith.constant -0.284496725 : f32
    %83 = vector.broadcast %cst_35 : f32 to vector<16x64xf32>
    %84 = arith.addf %82, %83 : vector<16x64xf32>
    %85 = arith.mulf %84, %74 : vector<16x64xf32>
    %cst_36 = arith.constant 0.254829586 : f32
    %86 = vector.broadcast %cst_36 : f32 to vector<16x64xf32>
    %87 = arith.addf %85, %86 : vector<16x64xf32>
    %88 = arith.mulf %87, %74 : vector<16x64xf32>
    %cst_37 = arith.constant 0.000000e+00 : f32
    %89 = vector.broadcast %cst_37 : f32 to vector<16x64xf32>
    %90 = arith.subf %89, %68 : vector<16x64xf32>
    %91 = arith.mulf %90, %68 : vector<16x64xf32>
    %92 = math.exp %91 : vector<16x64xf32>
    %93 = arith.mulf %88, %92 : vector<16x64xf32>
    %cst_38 = arith.constant 1.000000e+00 : f32
    %94 = vector.broadcast %cst_38 : f32 to vector<16x64xf32>
    %95 = arith.subf %94, %93 : vector<16x64xf32>
    %cst_39 = arith.constant 0.000000e+00 : f32
    %96 = vector.broadcast %cst_39 : f32 to vector<16x64xf32>
    %97 = arith.cmpf olt, %67, %96 : vector<16x64xf32>
    %cst_40 = arith.constant 0.000000e+00 : f32
    %98 = vector.broadcast %cst_40 : f32 to vector<16x64xf32>
    %99 = arith.subf %98, %95 : vector<16x64xf32>
    %100 = arith.select %97, %99, %95 : vector<16x64xi1>, vector<16x64xf32>
    %cst_41 = arith.constant 1.000000e+00 : f32
    %101 = vector.broadcast %cst_41 : f32 to vector<16x64xf32>
    %102 = arith.addf %101, %100 : vector<16x64xf32>
    %103 = arith.mulf %65, %102 : vector<16x64xf32>
    %cst_42 = arith.constant dense<0.000000e+00> : vector<16x32xf32>
    %104 = tpu.matmul %103, %4, %cst_42 {dimension_numbers = #tpu.dot_dimension_numbers<[1], [1], [0], [0], [0, 0, 1, 0], [], []>} : vector<16x64xf32>, vector<32x64xf32>, vector<16x32xf32> -> vector<16x32xf32>
    %105 = vector.broadcast %8 : vector<1x32xf32> to vector<16x32xf32>
    %106 = arith.addf %104, %105 : vector<16x32xf32>
    %107 = arith.addf %60, %106 : vector<16x32xf32>
    %cst_43 = arith.constant dense<0.000000e+00> : vector<16xf32>
    %108 = vector.multi_reduction <add>, %107, %cst_43 [1] : vector<16x32xf32> to vector<16xf32>
    %109 = vector.shape_cast %108 : vector<16xf32> to vector<16x1xf32>
    %cst_44 = arith.constant 3.200000e+01 : f32
    %110 = vector.broadcast %cst_44 : f32 to vector<16x1xf32>
    %111 = arith.divf %109, %110 : vector<16x1xf32>
    %112 = vector.broadcast %111 : vector<16x1xf32> to vector<16x32xf32>
    %113 = arith.subf %107, %112 : vector<16x32xf32>
    %114 = arith.mulf %113, %113 : vector<16x32xf32>
    %cst_45 = arith.constant dense<0.000000e+00> : vector<16xf32>
    %115 = vector.multi_reduction <add>, %114, %cst_45 [1] : vector<16x32xf32> to vector<16xf32>
    %116 = vector.shape_cast %115 : vector<16xf32> to vector<16x1xf32>
    %cst_46 = arith.constant 3.200000e+01 : f32
    %117 = vector.broadcast %cst_46 : f32 to vector<16x1xf32>
    %118 = arith.divf %116, %117 : vector<16x1xf32>
    %cst_47 = arith.constant 9.99999974E-6 : f32
    %119 = vector.broadcast %cst_47 : f32 to vector<16x1xf32>
    %120 = arith.addf %118, %119 : vector<16x1xf32>
    %121 = math.rsqrt %120 : vector<16x1xf32>
    %122 = vector.broadcast %121 : vector<16x1xf32> to vector<16x32xf32>
    %123 = arith.mulf %113, %122 : vector<16x32xf32>
    %124 = vector.broadcast %11 : vector<1x32xf32> to vector<16x32xf32>
    %125 = arith.mulf %123, %124 : vector<16x32xf32>
    %126 = vector.broadcast %12 : vector<1x32xf32> to vector<16x32xf32>
    %127 = arith.addf %125, %126 : vector<16x32xf32>
    %c0_48 = arith.constant 0 : index
    %c0_49 = arith.constant 0 : index
    %128 = vector.load %arg3[%c0_48, %c0_49] : memref<16x32xf32, #tpu.memory_space<vmem>>, vector<16x32xf32>
    tpu.vector_store %arg3[%c0_48, %c0_49], %127 {strides = array<i32>} : memref<16x32xf32, #tpu.memory_space<vmem>>, vector<16x32xf32>,
    return
  }
}

</mosaic_0001>

<llo_original>
// kernel: transformer_block.1
$region0: #{transformer_block.1}
  #allocation0 [shape = 'u32[]', space=smem, size = 0x4, offset = 0x4, fixed_abs, tag = 'smem constant byte address 0x4 - core index']
  #allocation1 [shape = 'u32[144,128]{1,0:T(1,128)}', space=vmem, size = 0x12000, scoped, tag = 'internal scratch']
  %s0 = inlined_call_operand.hbm [shape: f32[16,32], index: 0, kind: input, shape index: {}]
  %s1 = inlined_call_operand.hbm [shape: f32[32,512], index: 1, kind: input, shape index: {}]
  %s2 = inlined_call_operand.hbm [shape: f32[88,128], index: 2, kind: input, shape index: {}]
  %s3 = inlined_call_operand.hbm [shape: f32[16,32], index: 3, kind: output, shape index: {}]
  %s4 = sld [smem:[#allocation0]]
  $region34: #{transformer_block.1} parent=0
    _
  %s6 = ssub.s32 1, %s4
  %s7 = scalar_select 0, %s6, %s4
  $region1: #{transformer_block.1} parent=0
    #allocation2 [shape = 'u8[8192]{0}', space=vmem, size = 0x2000, scoped, tag = 'input window, operand 0, single buffered']
    #allocation3 [shape = 's32[1]{0}', space=sflag, size = 0x4, scoped, tag = 'scoped memory for transformer_block.1']
    #allocation4 [shape = 's32[1]{0}', space=sflag, size = 0x4, scoped, tag = 'scoped memory for transformer_block.1']
    #allocation5 [shape = 'u8[65536]{0}', space=vmem, size = 0x10000, scoped, tag = 'input window, operand 1, single buffered']
    #allocation6 [shape = 's32[1]{0}', space=sflag, size = 0x4, scoped, tag = 'scoped memory for transformer_block.1']
    #allocation7 [shape = 'u8[45056]{0}', space=vmem, size = 0xb000, scoped, tag = 'input window, operand 2, single buffered']
    #allocation8 [shape = 'u8[8192]{0}', space=vmem, size = 0x2000, scoped, tag = 'output window, operand 0, single buffered']
    %8 = vsyncpa [#allocation3], 0
    %9 = vsyncpa [#allocation6], 0
    %10 = vsyncpa [#allocation4], 0
    // Predicated region
    $region2: #{transformer_block.1} parent=1 // pred_check
      _
    $region3: #{transformer_block.1} parent=1 // pred_check_branch
      %12 = sbr.rel (0) target = $region5
    $region4: #{transformer_block.1} parent=1 // pred_region
      %s14 = ssub.s32 256, 256
      %15 = vsyncadd [#allocation3], %s14
      %s16 = sshll.u32 [#allocation2], 4
      %s17 = int_to_ptr.vmem [resolvable:$true] %s16
      %22 = dma.hbm_to_vmem [thread:$0]  %s0, 256, %s17, [#allocation3], 128, 128, 8
    $region5: #{transformer_block.1} parent=1 // pred_fallthru
      _
    // Predicated region
    $region6: #{transformer_block.1} parent=1 // pred_check
      _
    $region7: #{transformer_block.1} parent=1 // pred_check_branch
      %24 = sbr.rel (0) target = $region9
    $region8: #{transformer_block.1} parent=1 // pred_region
      %s26 = ssub.s32 2048, 2048
      %27 = vsyncadd [#allocation6], %s26
      %s28 = sshll.u32 [#allocation5], 4
      %s29 = int_to_ptr.vmem [resolvable:$true] %s28
      %34 = dma.hbm_to_vmem [thread:$0]  %s1, 2048, %s29, [#allocation6], 512, 512, 32
    $region9: #{transformer_block.1} parent=1 // pred_fallthru
      _
    // Predicated region
    $region10: #{transformer_block.1} parent=1 // pred_check
      _
    $region11: #{transformer_block.1} parent=1 // pred_check_branch
      %36 = sbr.rel (0) target = $region13
    $region12: #{transformer_block.1} parent=1 // pred_region
      %s38 = ssub.s32 1408, 1408
      %39 = vsyncadd [#allocation6], %s38
      %s40 = sshll.u32 [#allocation7], 4
      %s41 = int_to_ptr.vmem [resolvable:$true] %s40
      %46 = dma.hbm_to_vmem [thread:$0]  %s2, 1408, %s41, [#allocation6], 128, 128, 8
    $region13: #{transformer_block.1} parent=1 // pred_fallthru
      _
    // Predicated region
    $region14: #{transformer_block.1} parent=1 // pred_check
      _
    $region15: #{transformer_block.1} parent=1 // pred_check_branch
      %48 = sbr.rel (0) target = $region17
    $region16: #{transformer_block.1} parent=1 // pred_region
      %49 = dma.done [#allocation3], 256
    $region17: #{transformer_block.1} parent=1 // pred_fallthru
      _
    // Predicated region
    $region18: #{transformer_block.1} parent=1 // pred_check
      _
    $region19: #{transformer_block.1} parent=1 // pred_check_branch
      %51 = sbr.rel (0) target = $region21
    $region20: #{transformer_block.1} parent=1 // pred_region
      %52 = dma.done [#allocation6], 2048
    $region21: #{transformer_block.1} parent=1 // pred_fallthru
      _
    // Predicated region
    $region22: #{transformer_block.1} parent=1 // pred_check
      _
    $region23: #{transformer_block.1} parent=1 // pred_check_branch
      %54 = sbr.rel (0) target = $region25
    $region24: #{transformer_block.1} parent=1 // pred_region
      %55 = dma.done [#allocation6], 1408
    $region25: #{transformer_block.1} parent=1 // pred_fallthru
      _
    %v56 = vld [vmem:[#allocation2] sm:$0xff]
    %v57 = vld [vmem:[#allocation2 + $0x8] sm:$0xff]
    %v58 = vld [vmem:[#allocation5] sm:$0xff]
    %v59 = vld [vmem:[#allocation5 + $0x20] sm:$0xff]
    %v60 = vld [vmem:[#allocation5 + $0x40] sm:$0xff]
    %v61 = vld [vmem:[#allocation5 + $0x60] sm:$0xff]
    %v62 = vld [vmem:[#allocation5 + $0x8] sm:$0xff]
    %v63 = vld [vmem:[#allocation5 + $0x28] sm:$0xff]
    %v64 = vld [vmem:[#allocation5 + $0x48] sm:$0xff]
    %v65 = vld [vmem:[#allocation5 + $0x68] sm:$0xff]
    %v66 = vld [vmem:[#allocation5 + $0x10] sm:$0xff]
    %v67 = vld [vmem:[#allocation5 + $0x30] sm:$0xff]
    %v68 = vld [vmem:[#allocation5 + $0x50] sm:$0xff]
    %v69 = vld [vmem:[#allocation5 + $0x70] sm:$0xff]
    %v70 = vld [vmem:[#allocation5 + $0x18] sm:$0xff]
    %v71 = vld [vmem:[#allocation5 + $0x38] sm:$0xff]
    %v72 = vld [vmem:[#allocation5 + $0x58] sm:$0xff]
    %v73 = vld [vmem:[#allocation5 + $0x78] sm:$0xff]
    %v74 = vld [vmem:[#allocation7] sm:$0x1]
    %v75 = vld [vmem:[#allocation7 + $0x1] sm:$0x1]
    %v76 = vld [vmem:[#allocation7 + $0x2] sm:$0x1]
    %v77 = vld [vmem:[#allocation7 + $0x3] sm:$0x1]
    %v78 = vld [vmem:[#allocation7 + $0x4] sm:$0x1]
    %v79 = vld [vmem:[#allocation7 + $0x5] sm:$0x1]
    %v80 = vld [vmem:[#allocation7 + $0x6] sm:$0x1]
    %v81 = vld [vmem:[#allocation7 + $0x7] sm:$0x1]
    %v82 = vld [vmem:[#allocation7 + $0x8] sm:$0xff]
    %v83 = vld [vmem:[#allocation7 + $0x10] sm:$0xff]
    %v84 = vld [vmem:[#allocation7 + $0x18] sm:$0xff]
    %v85 = vld [vmem:[#allocation7 + $0x20] sm:$0xff]
    %v86 = vld [vmem:[#allocation7 + $0x28] sm:$0xff]
    %v87 = vld [vmem:[#allocation7 + $0x30] sm:$0xff]
    %v88 = vld [vmem:[#allocation7 + $0x38] sm:$0xff]
    %v89 = vld [vmem:[#allocation7 + $0x40] sm:$0xff]
    %v90 = vld [vmem:[#allocation7 + $0x48] sm:$0xff]
    %v91 = vld [vmem:[#allocation7 + $0x50] sm:$0xff]
    %v92 = vlaneseq
    %v93 = vshrl.u32 %v92, 7
    %v94 = vsub.s32 0, %v93
    %v95 = vrot.slane %v74, %v94
    %vm96 = vcmask 261120
    %v98 = vsel %vm96, %v56, 0
    %v101 = vsel %vm96, %v57, 0
    %103 = vmatprep.subr.mxu0 0.0
    %104 = vmatpush1.msra.mxu0 %v58
    %105 = vmatprep.subr.mxu0 0.0
    %106 = vmatpush1.msra.mxu0 %v59
    %107 = vmatprep.subr.mxu0 0.0
    %108 = vmatpush1.msra.mxu0 %v60
    %109 = vmatprep.subr.mxu0 0.0
    %110 = vmatpush1.msra.mxu0 %v61
    %111 = vmatprep.subr.mxu0 0.0
    %112 = vmatpush1.msra.mxu0 0.0
    %113 = vmatprep.subr.mxu0 0.0
    %114 = vmatpush1.msra.mxu0 0.0
    %115 = vmatprep.subr.mxu0 0.0
    %116 = vmatpush1.msra.mxu0 0.0
    %117 = vmatprep.subr.mxu0 0.0
    %118 = vmatpush1.msra.mxu0 0.0
    %119 = vmatprep.subr.mxu0 0.0
    %120 = vmatpush1.msra.mxu0 0.0
    %121 = vmatprep.subr.mxu0 0.0
    %122 = vmatpush1.msra.mxu0 0.0
    %123 = vmatprep.subr.mxu0 0.0
    %124 = vmatpush1.msra.mxu0 0.0
    %125 = vmatprep.subr.mxu0 0.0
    %126 = vmatpush1.msra.mxu0 0.0
    %127 = vmatprep.subr.mxu0 0.0
    %128 = vmatpush1.msra.mxu0 0.0
    %129 = vmatprep.subr.mxu0 0.0
    %130 = vmatpush1.msra.mxu0 0.0
    %131 = vmatprep.subr.mxu0 0.0
    %132 = vmatpush1.msra.mxu0 0.0
    %133 = vmatprep.subr.mxu0 0.0
    %134 = vmatpush1.msra.mxu0 0.0
    %135 = vmatprep.subr.mxu0 0.0
    %136 = vmatpush1.msra.mxu0 0.0
    %137 = vmatprep.subr.mxu0 0.0
    %138 = vmatpush1.msra.mxu0 0.0
    %139 = vmatprep.subr.mxu0 0.0
    %140 = vmatpush1.msra.mxu0 0.0
    %141 = vmatprep.subr.mxu0 0.0
    %142 = vmatpush1.msra.mxu0 0.0
    %143 = vmatprep.subr.mxu0 0.0
    %144 = vmatpush1.msra.mxu0 0.0
    %145 = vmatprep.subr.mxu0 0.0
    %146 = vmatpush1.msra.mxu0 0.0
    %147 = vmatprep.subr.mxu0 0.0
    %148 = vmatpush1.msra.mxu0 0.0
    %149 = vmatprep.subr.mxu0 0.0
    %150 = vmatpush1.msra.mxu0 0.0
    %151 = vmatprep.subr.mxu0 0.0
    %152 = vmatpush1.msra.mxu0 0.0
    %153 = vmatprep.subr.mxu0 0.0
    %154 = vmatpush1.msra.mxu0 0.0
    %155 = vmatprep.subr.mxu0 0.0
    %156 = vmatpush1.msra.mxu0 0.0
    %157 = vmatprep.subr.mxu0 0.0
    %158 = vmatpush1.msra.mxu0 0.0
    %159 = vmatprep.subr.mxu0 0.0
    %160 = vmatpush1.msra.mxu0 0.0
    %161 = vmatprep.subr.mxu0 0.0
    %162 = vmatpush1.msra.mxu0 0.0
    %163 = vmatprep.subr.mxu0 0.0
    %164 = vmatpush1.msra.mxu0 0.0
    %165 = vmatprep.subr.mxu0 0.0
    %166 = vmatpush1.msra.mxu0 0.0
    %167 = vmatprep.mubr.f32.mxu0 0.0
    %168 = vmatmul.mubr.f32.gmra.mrb[0].mxu0 %v98
    %v169 = vpop.f32.mrb[0].mxu0
    %v170 = vadd.f32 %v95, %v169
    %v171 = vpop.f32.mrb[0].mxu0
    %172 = vmatprep.mubr.f32.mxu0 0.0
    %173 = vmatmul.mubr.f32.gmra.mrb[0].mxu0 %v101
    %v174 = vpop.f32.mrb[0].mxu0
    %v175 = vadd.f32 %v95, %v174
    %v176 = vpop.f32.mrb[0].mxu0
    %177 = vdwg.mxu0
    %186 = vrot.lane.b32.xlu0 %v82, 32
    %v187 = vpop.permute.xlu0 %186
    %188 = vrot.lane.b32.xlu0 %v83, 32
    %v189 = vpop.permute.xlu0 %188
    %190 = vrot.lane.b32.xlu0 %v84, 32
    %v191 = vpop.permute.xlu0 %190
    %192 = vrot.lane.b32.xlu0 %v85, 32
    %v193 = vpop.permute.xlu0 %192
    %194 = vrot.lane.b32.xlu0 %v86, 32
    %v195 = vpop.permute.xlu0 %194
    %196 = vrot.lane.b32.xlu0 %v87, 32
    %v197 = vpop.permute.xlu0 %196
    %198 = vrot.lane.b32.xlu0 %v88, 32
    %v199 = vpop.permute.xlu0 %198
    %200 = vrot.lane.b32.xlu0 %v89, 32
    %v201 = vpop.permute.xlu0 %200
    %v210 = vmul.f32 %v170, %v187
    %v211 = vmul.f32 %v175, %v189
    %v212 = vmul.f32 %v170, %v191
    %v213 = vmul.f32 %v175, %v193
    %v214 = vmul.f32 %v170, %v195
    %v215 = vmul.f32 %v175, %v197
    %v216 = vmul.f32 %v170, %v199
    %v217 = vmul.f32 %v175, %v201
    %226 = vrot.lane.b32.xlu0 %v210, 96
    %v227 = vpop.permute.xlu0 %226
    %228 = vrot.lane.b32.xlu0 %v211, 96
    %v229 = vpop.permute.xlu0 %228
    %230 = vrot.lane.b32.xlu0 %v212, 96
    %v231 = vpop.permute.xlu0 %230
    %232 = vrot.lane.b32.xlu0 %v213, 96
    %v233 = vpop.permute.xlu0 %232
    %234 = vrot.lane.b32.xlu0 %v214, 96
    %v235 = vpop.permute.xlu0 %234
    %236 = vrot.lane.b32.xlu0 %v215, 96
    %v237 = vpop.permute.xlu0 %236
    %238 = vrot.lane.b32.xlu0 %v216, 96
    %v239 = vpop.permute.xlu0 %238
    %240 = vrot.lane.b32.xlu0 %v217, 96
    %v241 = vpop.permute.xlu0 %240
    %v243 = vsel %vm96, %v170, 0
    %v246 = vsel %vm96, %v175, 0
    %v248 = vsel %vm96, %v227, 0
    %v250 = vsel %vm96, %v229, 0
    %v252 = vsel %vm96, %v231, 0
    %v254 = vsel %vm96, %v233, 0
    %v256 = vsel %vm96, %v235, 0
    %v258 = vsel %vm96, %v237, 0
    %v260 = vsel %vm96, %v239, 0
    %v262 = vsel %vm96, %v241, 0
    %264 = vmatprep.subr.mxu0 0.0
    %265 = vmatpush1.xpose.msra.mxu0 %v248
    %266 = vmatprep.subr.mxu0 0.0
    %267 = vmatpush1.xpose.msra.mxu0 %v250
    %268 = vmatprep.subr.mxu0 0.0
    %269 = vmatpush1.xpose.msra.mxu0 %v252
    %270 = vmatprep.subr.mxu0 0.0
    %271 = vmatpush1.xpose.msra.mxu0 %v254
    %272 = vmatprep.subr.mxu0 0.0
    %273 = vmatpush1.xpose.msra.mxu0 %v256
    %274 = vmatprep.subr.mxu0 0.0
    %275 = vmatpush1.xpose.msra.mxu0 %v258
    %276 = vmatprep.subr.mxu0 0.0
    %277 = vmatpush1.xpose.msra.mxu0 %v260
    %278 = vmatprep.subr.mxu0 0.0
    %279 = vmatpush1.xpose.msra.mxu0 %v262
    %280 = vmatprep.subr.mxu0 0.0
    %281 = vmatpush1.xpose.msra.mxu0 0.0
    %282 = vmatprep.subr.mxu0 0.0
    %283 = vmatpush1.xpose.msra.mxu0 0.0
    %284 = vmatprep.subr.mxu0 0.0
    %285 = vmatpush1.xpose.msra.mxu0 0.0
    %286 = vmatprep.subr.mxu0 0.0
    %287 = vmatpush1.xpose.msra.mxu0 0.0
    %288 = vmatprep.subr.mxu0 0.0
    %289 = vmatpush1.xpose.msra.mxu0 0.0
    %290 = vmatprep.subr.mxu0 0.0
    %291 = vmatpush1.xpose.msra.mxu0 0.0
    %292 = vmatprep.subr.mxu0 0.0
    %293 = vmatpush1.xpose.msra.mxu0 0.0
    %294 = vmatprep.subr.mxu0 0.0
    %295 = vmatpush1.xpose.msra.mxu0 0.0
    %296 = vmatprep.subr.mxu0 0.0
    %297 = vmatpush1.xpose.msra.mxu0 0.0
    %298 = vmatprep.subr.mxu0 0.0
    %299 = vmatpush1.xpose.msra.mxu0 0.0
    %300 = vmatprep.subr.mxu0 0.0
    %301 = vmatpush1.xpose.msra.mxu0 0.0
    %302 = vmatprep.subr.mxu0 0.0
    %303 = vmatpush1.xpose.msra.mxu0 0.0
    %304 = vmatprep.subr.mxu0 0.0
    %305 = vmatpush1.xpose.msra.mxu0 0.0
    %306 = vmatprep.subr.mxu0 0.0
    %307 = vmatpush1.xpose.msra.mxu0 0.0
    %308 = vmatprep.subr.mxu0 0.0
    %309 = vmatpush1.xpose.msra.mxu0 0.0
    %310 = vmatprep.subr.mxu0 0.0
    %311 = vmatpush1.xpose.msra.mxu0 0.0
    %312 = vmatprep.subr.mxu0 0.0
    %313 = vmatpush1.xpose.msra.mxu0 0.0
    %314 = vmatprep.subr.mxu0 0.0
    %315 = vmatpush1.xpose.msra.mxu0 0.0
    %316 = vmatprep.subr.mxu0 0.0
    %317 = vmatpush1.xpose.msra.mxu0 0.0
    %318 = vmatprep.subr.mxu0 0.0
    %319 = vmatpush1.xpose.msra.mxu0 0.0
    %320 = vmatprep.subr.mxu0 0.0
    %321 = vmatpush1.xpose.msra.mxu0 0.0
    %322 = vmatprep.subr.mxu0 0.0
    %323 = vmatpush1.xpose.msra.mxu0 0.0
    %324 = vmatprep.subr.mxu0 0.0
    %325 = vmatpush1.xpose.msra.mxu0 0.0
    %326 = vmatprep.subr.mxu0 0.0
    %327 = vmatpush1.xpose.msra.mxu0 0.0
    %328 = vmatprep.mubr.f32.mxu0 0.0
    %329 = vmatmul.mubr.f32.gmra.mrb[0].mxu0 %v243
    %v330 = vpop.f32.mrb[0].mxu0
    %v331 = vadd.f32 %v90, %v330
    %v332 = vpop.f32.mrb[0].mxu0
    %333 = vmatprep.mubr.f32.mxu0 0.0
    %334 = vmatmul.mubr.f32.gmra.mrb[0].mxu0 %v246
    %v335 = vpop.f32.mrb[0].mxu0
    %v336 = vadd.f32 %v91, %v335
    %v337 = vpop.f32.mrb[0].mxu0
    %338 = vdwg.mxu0
    %vm339 = vcmask 523264
    %v340 = vsel %vm339, %v331, -inf
    %341 = vmax.xlane.f32.xlu0 %v340
    %v342 = vpop.xlane.xlu0 %341
    %v343 = vsel %vm339, %v336, -inf
    %344 = vmax.xlane.f32.xlu0 %v343
    %v345 = vpop.xlane.xlu0 %344
    %v346 = vsub.f32 %v331, %v342
    %v347 = vsub.f32 %v336, %v345
    %v348 = vmul.f32 %v346, 1.442695
    %v349 = vpow.pop %v348
    %v350 = vmul.f32 %v347, 1.442695
    %v351 = vpow.pop %v350
    %352 = vrot.lane.b32.xlu0 %v82, 64
    %v353 = vpop.permute.xlu0 %352
    %354 = vrot.lane.b32.xlu0 %v83, 64
    %v355 = vpop.permute.xlu0 %354
    %356 = vrot.lane.b32.xlu0 %v84, 64
    %v357 = vpop.permute.xlu0 %356
    %358 = vrot.lane.b32.xlu0 %v85, 64
    %v359 = vpop.permute.xlu0 %358
    %360 = vrot.lane.b32.xlu0 %v86, 64
    %v361 = vpop.permute.xlu0 %360
    %362 = vrot.lane.b32.xlu0 %v87, 64
    %v363 = vpop.permute.xlu0 %362
    %364 = vrot.lane.b32.xlu0 %v88, 64
    %v365 = vpop.permute.xlu0 %364
    %366 = vrot.lane.b32.xlu0 %v89, 64
    %v367 = vpop.permute.xlu0 %366
    %v376 = vmul.f32 %v170, %v353
    %v377 = vmul.f32 %v175, %v355
    %v378 = vmul.f32 %v170, %v357
    %v379 = vmul.f32 %v175, %v359
    %v380 = vmul.f32 %v170, %v361
    %v381 = vmul.f32 %v175, %v363
    %v382 = vmul.f32 %v170, %v365
    %v383 = vmul.f32 %v175, %v367
    %392 = vrot.lane.b32.xlu0 %v376, 64
    %v393 = vpop.permute.xlu0 %392
    %394 = vrot.lane.b32.xlu0 %v377, 64
    %v395 = vpop.permute.xlu0 %394
    %396 = vrot.lane.b32.xlu0 %v378, 64
    %v397 = vpop.permute.xlu0 %396
    %398 = vrot.lane.b32.xlu0 %v379, 64
    %v399 = vpop.permute.xlu0 %398
    %400 = vrot.lane.b32.xlu0 %v380, 64
    %v401 = vpop.permute.xlu0 %400
    %402 = vrot.lane.b32.xlu0 %v381, 64
    %v403 = vpop.permute.xlu0 %402
    %404 = vrot.lane.b32.xlu0 %v382, 64
    %v405 = vpop.permute.xlu0 %404
    %406 = vrot.lane.b32.xlu0 %v383, 64
    %v407 = vpop.permute.xlu0 %406
    %v416 = vsel %vm96, %v393, %v187
    %v417 = vsel %vm96, %v395, %v189
    %v418 = vsel %vm96, %v397, %v191
    %v419 = vsel %vm96, %v399, %v193
    %v420 = vsel %vm96, %v401, %v195
    %v421 = vsel %vm96, %v403, %v197
    %v422 = vsel %vm96, %v405, %v199
    %v423 = vsel %vm96, %v407, %v201
    %v425 = vsel %vm339, %v349, 0
    %v428 = vsel %vm339, %v351, 0
    %430 = vmatprep.subr.mxu0 0.0
    %431 = vmatpush1.msra.mxu0 %v416
    %432 = vmatprep.subr.mxu0 0.0
    %433 = vmatpush1.msra.mxu0 %v417
    %434 = vmatprep.subr.mxu0 0.0
    %435 = vmatpush1.msra.mxu0 %v418
    %436 = vmatprep.subr.mxu0 0.0
    %437 = vmatpush1.msra.mxu0 %v419
    %438 = vmatprep.subr.mxu0 0.0
    %439 = vmatpush1.msra.mxu0 %v420
    %440 = vmatprep.subr.mxu0 0.0
    %441 = vmatpush1.msra.mxu0 %v421
    %442 = vmatprep.subr.mxu0 0.0
    %443 = vmatpush1.msra.mxu0 %v422
    %444 = vmatprep.subr.mxu0 0.0
    %445 = vmatpush1.msra.mxu0 %v423
    %446 = vmatprep.subr.mxu0 0.0
    %447 = vmatpush1.msra.mxu0 0.0
    %448 = vmatprep.subr.mxu0 0.0
    %449 = vmatpush1.msra.mxu0 0.0
    %450 = vmatprep.subr.mxu0 0.0
    %451 = vmatpush1.msra.mxu0 0.0
    %452 = vmatprep.subr.mxu0 0.0
    %453 = vmatpush1.msra.mxu0 0.0
    %454 = vmatprep.subr.mxu0 0.0
    %455 = vmatpush1.msra.mxu0 0.0
    %456 = vmatprep.subr.mxu0 0.0
    %457 = vmatpush1.msra.mxu0 0.0
    %458 = vmatprep.subr.mxu0 0.0
    %459 = vmatpush1.msra.mxu0 0.0
    %460 = vmatprep.subr.mxu0 0.0
    %461 = vmatpush1.msra.mxu0 0.0
    %462 = vmatprep.subr.mxu0 0.0
    %463 = vmatpush1.msra.mxu0 0.0
    %464 = vmatprep.subr.mxu0 0.0
    %465 = vmatpush1.msra.mxu0 0.0
    %466 = vmatprep.subr.mxu0 0.0
    %467 = vmatpush1.msra.mxu0 0.0
    %468 = vmatprep.subr.mxu0 0.0
    %469 = vmatpush1.msra.mxu0 0.0
    %470 = vmatprep.subr.mxu0 0.0
    %471 = vmatpush1.msra.mxu0 0.0
    %472 = vmatprep.subr.mxu0 0.0
    %473 = vmatpush1.msra.mxu0 0.0
    %474 = vmatprep.subr.mxu0 0.0
    %475 = vmatpush1.msra.mxu0 0.0
    %476 = vmatprep.subr.mxu0 0.0
    %477 = vmatpush1.msra.mxu0 0.0
    %478 = vmatprep.subr.mxu0 0.0
    %479 = vmatpush1.msra.mxu0 0.0
    %480 = vmatprep.subr.mxu0 0.0
    %481 = vmatpush1.msra.mxu0 0.0
    %482 = vmatprep.subr.mxu0 0.0
    %483 = vmatpush1.msra.mxu0 0.0
    %484 = vmatprep.subr.mxu0 0.0
    %485 = vmatpush1.msra.mxu0 0.0
    %486 = vmatprep.subr.mxu0 0.0
    %487 = vmatpush1.msra.mxu0 0.0
    %488 = vmatprep.subr.mxu0 0.0
    %489 = vmatpush1.msra.mxu0 0.0
    %490 = vmatprep.subr.mxu0 0.0
    %491 = vmatpush1.msra.mxu0 0.0
    %492 = vmatprep.subr.mxu0 0.0
    %493 = vmatpush1.msra.mxu0 0.0
    %494 = vmatprep.mubr.f32.mxu0 0.0
    %495 = vmatmul.mubr.f32.gmra.mrb[0].mxu0 %v425
    %v496 = vpop.f32.mrb[0].mxu0
    %v497 = vadd.f32 0.0, %v496
    %v498 = vpop.f32.mrb[0].mxu0
    %499 = vmatprep.mubr.f32.mxu0 0.0
    %500 = vmatmul.mubr.f32.gmra.mrb[0].mxu0 %v428
    %v501 = vpop.f32.mrb[0].mxu0
    %v502 = vadd.f32 0.0, %v501
    %v503 = vpop.f32.mrb[0].mxu0
    %504 = vdwg.mxu0
    %507 = vrot.lane.b32.xlu0 %v497, 96
    %v508 = vpop.permute.xlu0 %507
    %509 = vrot.lane.b32.xlu0 %v502, 96
    %v510 = vpop.permute.xlu0 %509
    %v513 = vrcp.pop %v508
    %v514 = vmul.f32 %v497, %v513
    %v515 = vrcp.pop %v510
    %v516 = vmul.f32 %v502, %v515
    %v517 = vlaneseq
    %v518 = vshrl.u32 %v517, 7
    %v519 = vsub.s32 0, %v518
    %v520 = vrot.slane %v75, %v519
    %v522 = vsel %vm96, %v514, 0
    %v525 = vsel %vm96, %v516, 0
    %527 = vmatprep.subr.mxu0 0.0
    %528 = vmatpush1.msra.mxu0 %v62
    %529 = vmatprep.subr.mxu0 0.0
    %530 = vmatpush1.msra.mxu0 %v63
    %531 = vmatprep.subr.mxu0 0.0
    %532 = vmatpush1.msra.mxu0 %v64
    %533 = vmatprep.subr.mxu0 0.0
    %534 = vmatpush1.msra.mxu0 %v65
    %535 = vmatprep.subr.mxu0 0.0
    %536 = vmatpush1.msra.mxu0 0.0
    %537 = vmatprep.subr.mxu0 0.0
    %538 = vmatpush1.msra.mxu0 0.0
    %539 = vmatprep.subr.mxu0 0.0
    %540 = vmatpush1.msra.mxu0 0.0
    %541 = vmatprep.subr.mxu0 0.0
    %542 = vmatpush1.msra.mxu0 0.0
    %543 = vmatprep.subr.mxu0 0.0
    %544 = vmatpush1.msra.mxu0 0.0
    %545 = vmatprep.subr.mxu0 0.0
    %546 = vmatpush1.msra.mxu0 0.0
    %547 = vmatprep.subr.mxu0 0.0
    %548 = vmatpush1.msra.mxu0 0.0
    %549 = vmatprep.subr.mxu0 0.0
    %550 = vmatpush1.msra.mxu0 0.0
    %551 = vmatprep.subr.mxu0 0.0
    %552 = vmatpush1.msra.mxu0 0.0
    %553 = vmatprep.subr.mxu0 0.0
    %554 = vmatpush1.msra.mxu0 0.0
    %555 = vmatprep.subr.mxu0 0.0
    %556 = vmatpush1.msra.mxu0 0.0
    %557 = vmatprep.subr.mxu0 0.0
    %558 = vmatpush1.msra.mxu0 0.0
    %559 = vmatprep.subr.mxu0 0.0
    %560 = vmatpush1.msra.mxu0 0.0
    %561 = vmatprep.subr.mxu0 0.0
    %562 = vmatpush1.msra.mxu0 0.0
    %563 = vmatprep.subr.mxu0 0.0
    %564 = vmatpush1.msra.mxu0 0.0
    %565 = vmatprep.subr.mxu0 0.0
    %566 = vmatpush1.msra.mxu0 0.0
    %567 = vmatprep.subr.mxu0 0.0
    %568 = vmatpush1.msra.mxu0 0.0
    %569 = vmatprep.subr.mxu0 0.0
    %570 = vmatpush1.msra.mxu0 0.0
    %571 = vmatprep.subr.mxu0 0.0
    %572 = vmatpush1.msra.mxu0 0.0
    %573 = vmatprep.subr.mxu0 0.0
    %574 = vmatpush1.msra.mxu0 0.0
    %575 = vmatprep.subr.mxu0 0.0
    %576 = vmatpush1.msra.mxu0 0.0
    %577 = vmatprep.subr.mxu0 0.0
    %578 = vmatpush1.msra.mxu0 0.0
    %579 = vmatprep.subr.mxu0 0.0
    %580 = vmatpush1.msra.mxu0 0.0
    %581 = vmatprep.subr.mxu0 0.0
    %582 = vmatpush1.msra.mxu0 0.0
    %583 = vmatprep.subr.mxu0 0.0
    %584 = vmatpush1.msra.mxu0 0.0
    %585 = vmatprep.subr.mxu0 0.0
    %586 = vmatpush1.msra.mxu0 0.0
    %587 = vmatprep.subr.mxu0 0.0
    %588 = vmatpush1.msra.mxu0 0.0
    %589 = vmatprep.subr.mxu0 0.0
    %590 = vmatpush1.msra.mxu0 0.0
    %591 = vmatprep.mubr.f32.mxu0 0.0
    %592 = vmatmul.mubr.f32.gmra.mrb[0].mxu0 %v522
    %v593 = vpop.f32.mrb[0].mxu0
    %v594 = vadd.f32 %v520, %v593
    %v595 = vpop.f32.mrb[0].mxu0
    %596 = vmatprep.mubr.f32.mxu0 0.0
    %597 = vmatmul.mubr.f32.gmra.mrb[0].mxu0 %v525
    %v598 = vpop.f32.mrb[0].mxu0
    %v599 = vadd.f32 %v520, %v598
    %v600 = vpop.f32.mrb[0].mxu0
    %601 = vdwg.mxu0
    %v602 = vadd.f32 %v56, %v594
    %v603 = vadd.f32 %v57, %v599
    %v604 = vsel %vm96, %v602, 0.0
    %605 = vadd.xlane.f32.xlu0 %v604
    %v606 = vpop.xlane.xlu0 %605
    %v607 = vsel %vm96, %v603, 0.0
    %608 = vadd.xlane.f32.xlu0 %v607
    %v609 = vpop.xlane.xlu0 %608
    %v610 = vrcp.pop 32.0
    %v611 = vmul.f32 %v606, %v610
    %v612 = vmul.f32 %v609, %v610
    %v613 = vsub.f32 %v602, %v611
    %v614 = vsub.f32 %v603, %v612
    %v615 = vmul.f32 %v613, %v613
    %v616 = vmul.f32 %v614, %v614
    %v617 = vsel %vm96, %v615, 0.0
    %618 = vadd.xlane.f32.xlu0 %v617
    %v619 = vpop.xlane.xlu0 %618
    %v620 = vsel %vm96, %v616, 0.0
    %621 = vadd.xlane.f32.xlu0 %v620
    %v622 = vpop.xlane.xlu0 %621
    %v623 = vmul.f32 %v619, %v610
    %v624 = vmul.f32 %v622, %v610
    %v625 = vadd.f32 %v623, 1e-05
    %v626 = vadd.f32 %v624, 1e-05
    %v627 = vrsqrt.pop %v625
    %v628 = vrsqrt.pop %v626
    %v629 = vmul.f32 %v613, %v627
    %v630 = vmul.f32 %v614, %v628
    %v631 = vlaneseq
    %v632 = vshrl.u32 %v631, 7
    %v633 = vsub.s32 0, %v632
    %v634 = vrot.slane %v78, %v633
    %v635 = vmul.f32 %v629, %v634
    %v636 = vmul.f32 %v630, %v634
    %v637 = vlaneseq
    %v638 = vshrl.u32 %v637, 7
    %v639 = vsub.s32 0, %v638
    %v640 = vrot.slane %v79, %v639
    %v641 = vadd.f32 %v635, %v640
    %v642 = vadd.f32 %v636, %v640
    %v643 = vlaneseq
    %v644 = vshrl.u32 %v643, 7
    %v645 = vsub.s32 0, %v644
    %v646 = vrot.slane %v76, %v645
    %v648 = vsel %vm96, %v641, 0
    %v651 = vsel %vm96, %v642, 0
    %653 = vmatprep.subr.mxu0 0.0
    %654 = vmatpush1.msra.mxu0 %v66
    %655 = vmatprep.subr.mxu0 0.0
    %656 = vmatpush1.msra.mxu0 %v67
    %657 = vmatprep.subr.mxu0 0.0
    %658 = vmatpush1.msra.mxu0 %v68
    %659 = vmatprep.subr.mxu0 0.0
    %660 = vmatpush1.msra.mxu0 %v69
    %661 = vmatprep.subr.mxu0 0.0
    %662 = vmatpush1.msra.mxu0 0.0
    %663 = vmatprep.subr.mxu0 0.0
    %664 = vmatpush1.msra.mxu0 0.0
    %665 = vmatprep.subr.mxu0 0.0
    %666 = vmatpush1.msra.mxu0 0.0
    %667 = vmatprep.subr.mxu0 0.0
    %668 = vmatpush1.msra.mxu0 0.0
    %669 = vmatprep.subr.mxu0 0.0
    %670 = vmatpush1.msra.mxu0 0.0
    %671 = vmatprep.subr.mxu0 0.0
    %672 = vmatpush1.msra.mxu0 0.0
    %673 = vmatprep.subr.mxu0 0.0
    %674 = vmatpush1.msra.mxu0 0.0
    %675 = vmatprep.subr.mxu0 0.0
    %676 = vmatpush1.msra.mxu0 0.0
    %677 = vmatprep.subr.mxu0 0.0
    %678 = vmatpush1.msra.mxu0 0.0
    %679 = vmatprep.subr.mxu0 0.0
    %680 = vmatpush1.msra.mxu0 0.0
    %681 = vmatprep.subr.mxu0 0.0
    %682 = vmatpush1.msra.mxu0 0.0
    %683 = vmatprep.subr.mxu0 0.0
    %684 = vmatpush1.msra.mxu0 0.0
    %685 = vmatprep.subr.mxu0 0.0
    %686 = vmatpush1.msra.mxu0 0.0
    %687 = vmatprep.subr.mxu0 0.0
    %688 = vmatpush1.msra.mxu0 0.0
    %689 = vmatprep.subr.mxu0 0.0
    %690 = vmatpush1.msra.mxu0 0.0
    %691 = vmatprep.subr.mxu0 0.0
    %692 = vmatpush1.msra.mxu0 0.0
    %693 = vmatprep.subr.mxu0 0.0
    %694 = vmatpush1.msra.mxu0 0.0
    %695 = vmatprep.subr.mxu0 0.0
    %696 = vmatpush1.msra.mxu0 0.0
    %697 = vmatprep.subr.mxu0 0.0
    %698 = vmatpush1.msra.mxu0 0.0
    %699 = vmatprep.subr.mxu0 0.0
    %700 = vmatpush1.msra.mxu0 0.0
    %701 = vmatprep.subr.mxu0 0.0
    %702 = vmatpush1.msra.mxu0 0.0
    %703 = vmatprep.subr.mxu0 0.0
    %704 = vmatpush1.msra.mxu0 0.0
    %705 = vmatprep.subr.mxu0 0.0
    %706 = vmatpush1.msra.mxu0 0.0
    %707 = vmatprep.subr.mxu0 0.0
    %708 = vmatpush1.msra.mxu0 0.0
    %709 = vmatprep.subr.mxu0 0.0
    %710 = vmatpush1.msra.mxu0 0.0
    %711 = vmatprep.subr.mxu0 0.0
    %712 = vmatpush1.msra.mxu0 0.0
    %713 = vmatprep.subr.mxu0 0.0
    %714 = vmatpush1.msra.mxu0 0.0
    %715 = vmatprep.subr.mxu0 0.0
    %716 = vmatpush1.msra.mxu0 0.0
    %717 = vmatprep.mubr.f32.mxu0 0.0
    %718 = vmatmul.mubr.f32.gmra.mrb[0].mxu0 %v648
    %v719 = vpop.f32.mrb[0].mxu0
    %v720 = vadd.f32 %v646, %v719
    %v721 = vpop.f32.mrb[0].mxu0
    %722 = vmatprep.mubr.f32.mxu0 0.0
    %723 = vmatmul.mubr.f32.gmra.mrb[0].mxu0 %v651
    %v724 = vpop.f32.mrb[0].mxu0
    %v725 = vadd.f32 %v646, %v724
    %v726 = vpop.f32.mrb[0].mxu0
    %727 = vdwg.mxu0
    %v728 = vmul.f32 %v720, 0.5
    %v729 = vmul.f32 %v725, 0.5
    %v730 = vmul.f32 %v720, 0.70710677
    %v731 = vmul.f32 %v725, 0.70710677
    %v732 = vand.u32 2147483647, %v730
    %v733 = vand.u32 2147483647, %v731
    %v734 = vmul.f32 %v732, 0.3275911
    %v735 = vmul.f32 %v733, 0.3275911
    %v736 = vadd.f32 %v734, 1.0
    %v737 = vadd.f32 %v735, 1.0
    %v738 = vrcp.pop %v736
    %v739 = vmul.f32 1.0, %v738
    %v740 = vrcp.pop %v737
    %v741 = vmul.f32 1.0, %v740
    %v742 = vmul.f32 %v739, 1.0614054
    %v743 = vmul.f32 %v741, 1.0614054
    %v744 = vadd.f32 %v742, -1.4531521
    %v745 = vadd.f32 %v743, -1.4531521
    %v746 = vmul.f32 %v744, %v739
    %v747 = vmul.f32 %v745, %v741
    %v748 = vadd.f32 %v746, 1.4214138
    %v749 = vadd.f32 %v747, 1.4214138
    %v750 = vmul.f32 %v748, %v739
    %v751 = vmul.f32 %v749, %v741
    %v752 = vadd.f32 %v750, -0.28449672
    %v753 = vadd.f32 %v751, -0.28449672
    %v754 = vmul.f32 %v752, %v739
    %v755 = vmul.f32 %v753, %v741
    %v756 = vadd.f32 %v754, 0.2548296
    %v757 = vadd.f32 %v755, 0.2548296
    %v758 = vmul.f32 %v756, %v739
    %v759 = vmul.f32 %v757, %v741
    %v760 = vsub.f32 0.0, %v732
    %v761 = vsub.f32 0.0, %v733
    %v762 = vmul.f32 %v760, %v732
    %v763 = vmul.f32 %v761, %v733
    %v764 = vmul.f32 %v762, 1.442695
    %v765 = vpow.pop %v764
    %v766 = vmul.f32 %v763, 1.442695
    %v767 = vpow.pop %v766
    %v768 = vmul.f32 %v758, %v765
    %v769 = vmul.f32 %v759, %v767
    %v770 = vsub.f32 1.0, %v768
    %v771 = vsub.f32 1.0, %v769
    %vm772 = vcmp.lt.f32.partialorder %v730, 0.0
    %vm773 = vcmp.lt.f32.partialorder %v731, 0.0
    %v774 = vsub.f32 0.0, %v770
    %v775 = vsub.f32 0.0, %v771
    %v776 = vsel %vm772, %v774, %v770
    %v777 = vsel %vm773, %v775, %v771
    %v778 = vadd.f32 %v776, 1.0
    %v779 = vadd.f32 %v777, 1.0
    %v780 = vmul.f32 %v728, %v778
    %v781 = vmul.f32 %v729, %v779
    %v782 = vlaneseq
    %v783 = vshrl.u32 %v782, 7
    %v784 = vsub.s32 0, %v783
    %v785 = vrot.slane %v77, %v784
    %v787 = vsel %vm339, %v780, 0
    %v790 = vsel %vm339, %v781, 0
    %v793 = vsel %vm339, %v70, 0
    %v796 = vsel %vm339, %v71, 0
    %v799 = vsel %vm339, %v72, 0
    %v802 = vsel %vm339, %v73, 0
    %804 = vmatprep.subr.mxu0 0.0
    %805 = vmatpush1.xpose.msra.mxu0 %v793
    %806 = vmatprep.subr.mxu0 0.0
    %807 = vmatpush1.xpose.msra.mxu0 %v796
    %808 = vmatprep.subr.mxu0 0.0
    %809 = vmatpush1.xpose.msra.mxu0 %v799
    %810 = vmatprep.subr.mxu0 0.0
    %811 = vmatpush1.xpose.msra.mxu0 %v802
    %812 = vmatprep.subr.mxu0 0.0
    %813 = vmatpush1.xpose.msra.mxu0 0.0
    %814 = vmatprep.subr.mxu0 0.0
    %815 = vmatpush1.xpose.msra.mxu0 0.0
    %816 = vmatprep.subr.mxu0 0.0
    %817 = vmatpush1.xpose.msra.mxu0 0.0
    %818 = vmatprep.subr.mxu0 0.0
    %819 = vmatpush1.xpose.msra.mxu0 0.0
    %820 = vmatprep.subr.mxu0 0.0
    %821 = vmatpush1.xpose.msra.mxu0 0.0
    %822 = vmatprep.subr.mxu0 0.0
    %823 = vmatpush1.xpose.msra.mxu0 0.0
    %824 = vmatprep.subr.mxu0 0.0
    %825 = vmatpush1.xpose.msra.mxu0 0.0
    %826 = vmatprep.subr.mxu0 0.0
    %827 = vmatpush1.xpose.msra.mxu0 0.0
    %828 = vmatprep.subr.mxu0 0.0
    %829 = vmatpush1.xpose.msra.mxu0 0.0
    %830 = vmatprep.subr.mxu0 0.0
    %831 = vmatpush1.xpose.msra.mxu0 0.0
    %832 = vmatprep.subr.mxu0 0.0
    %833 = vmatpush1.xpose.msra.mxu0 0.0
    %834 = vmatprep.subr.mxu0 0.0
    %835 = vmatpush1.xpose.msra.mxu0 0.0
    %836 = vmatprep.subr.mxu0 0.0
    %837 = vmatpush1.xpose.msra.mxu0 0.0
    %838 = vmatprep.subr.mxu0 0.0
    %839 = vmatpush1.xpose.msra.mxu0 0.0
    %840 = vmatprep.subr.mxu0 0.0
    %841 = vmatpush1.xpose.msra.mxu0 0.0
    %842 = vmatprep.subr.mxu0 0.0
    %843 = vmatpush1.xpose.msra.mxu0 0.0
    %844 = vmatprep.subr.mxu0 0.0
    %845 = vmatpush1.xpose.msra.mxu0 0.0
    %846 = vmatprep.subr.mxu0 0.0
    %847 = vmatpush1.xpose.msra.mxu0 0.0
    %848 = vmatprep.subr.mxu0 0.0
    %849 = vmatpush1.xpose.msra.mxu0 0.0
    %850 = vmatprep.subr.mxu0 0.0
    %851 = vmatpush1.xpose.msra.mxu0 0.0
    %852 = vmatprep.subr.mxu0 0.0
    %853 = vmatpush1.xpose.msra.mxu0 0.0
    %854 = vmatprep.subr.mxu0 0.0
    %855 = vmatpush1.xpose.msra.mxu0 0.0
    %856 = vmatprep.subr.mxu0 0.0
    %857 = vmatpush1.xpose.msra.mxu0 0.0
    %858 = vmatprep.subr.mxu0 0.0
    %859 = vmatpush1.xpose.msra.mxu0 0.0
    %860 = vmatprep.subr.mxu0 0.0
    %861 = vmatpush1.xpose.msra.mxu0 0.0
    %862 = vmatprep.subr.mxu0 0.0
    %863 = vmatpush1.xpose.msra.mxu0 0.0
    %864 = vmatprep.subr.mxu0 0.0
    %865 = vmatpush1.xpose.msra.mxu0 0.0
    %866 = vmatprep.subr.mxu0 0.0
    %867 = vmatpush1.xpose.msra.mxu0 0.0
    %868 = vmatprep.mubr.f32.mxu0 0.0
    %869 = vmatmul.mubr.f32.gmra.mrb[0].mxu0 %v787
    %v870 = vpop.f32.mrb[0].mxu0
    %v871 = vadd.f32 %v785, %v870
    %v872 = vpop.f32.mrb[0].mxu0
    %873 = vmatprep.mubr.f32.mxu0 0.0
    %874 = vmatmul.mubr.f32.gmra.mrb[0].mxu0 %v790
    %v875 = vpop.f32.mrb[0].mxu0
    %v876 = vadd.f32 %v785, %v875
    %v877 = vpop.f32.mrb[0].mxu0
    %878 = vdwg.mxu0
    %v879 = vadd.f32 %v641, %v871
    %v880 = vadd.f32 %v642, %v876
    %v881 = vsel %vm96, %v879, 0.0
    %882 = vadd.xlane.f32.xlu0 %v881
    %v883 = vpop.xlane.xlu0 %882
    %v884 = vsel %vm96, %v880, 0.0
    %885 = vadd.xlane.f32.xlu0 %v884
    %v886 = vpop.xlane.xlu0 %885
    %v887 = vmul.f32 %v883, %v610
    %v888 = vmul.f32 %v886, %v610
    %v889 = vsub.f32 %v879, %v887
    %v890 = vsub.f32 %v880, %v888
    %v891 = vmul.f32 %v889, %v889
    %v892 = vmul.f32 %v890, %v890
    %v893 = vsel %vm96, %v891, 0.0
    %894 = vadd.xlane.f32.xlu0 %v893
    %v895 = vpop.xlane.xlu0 %894
    %v896 = vsel %vm96, %v892, 0.0
    %897 = vadd.xlane.f32.xlu0 %v896
    %v898 = vpop.xlane.xlu0 %897
    %v899 = vmul.f32 %v895, %v610
    %v900 = vmul.f32 %v898, %v610
    %v901 = vadd.f32 %v899, 1e-05
    %v902 = vadd.f32 %v900, 1e-05
    %v903 = vrsqrt.pop %v901
    %v904 = vrsqrt.pop %v902
    %v905 = vmul.f32 %v889, %v903
    %v906 = vmul.f32 %v890, %v904
    %v907 = vlaneseq
    %v908 = vshrl.u32 %v907, 7
    %v909 = vsub.s32 0, %v908
    %v910 = vrot.slane %v80, %v909
    %v911 = vmul.f32 %v905, %v910
    %v912 = vmul.f32 %v906, %v910
    %v913 = vlaneseq
    %v914 = vshrl.u32 %v913, 7
    %v915 = vsub.s32 0, %v914
    %v916 = vrot.slane %v81, %v915
    %v917 = vadd.f32 %v911, %v916
    %v918 = vadd.f32 %v912, %v916
    %919 = vst.msk [vmem:[#allocation8] sm:$0xff] %vm96, %v917
    %920 = vst.msk [vmem:[#allocation8 + $0x8] sm:$0xff] %vm96, %v918
    // Predicated region
    $region26: #{transformer_block.1} parent=1 // pred_check
      _
    $region27: #{transformer_block.1} parent=1 // pred_check_branch
      %922 = sbr.rel (0) target = $region29
    $region28: #{transformer_block.1} parent=1 // pred_region
      %s924 = ssub.s32 256, 256
      %925 = vsyncadd [#allocation4], %s924
      %s926 = sshll.u32 [#allocation8], 4
      %s927 = int_to_ptr.vmem [resolvable:$true] %s926
      %932 = dma.vmem_to_hbm [thread:$0]  %s927, 256, %s3, [#allocation4], 128, 128, 8
    $region29: #{transformer_block.1} parent=1 // pred_fallthru
      _
    // Predicated region
    $region30: #{transformer_block.1} parent=1 // pred_check
      _
    $region31: #{transformer_block.1} parent=1 // pred_check_branch
      %934 = sbr.rel (0) target = $region33
    $region32: #{transformer_block.1} parent=1 // pred_region
      %935 = dma.done [#allocation4], 256
    $region33: #{transformer_block.1} parent=1 // pred_fallthru
      _
    %936 = vsyncpa [#allocation3], 1
    %937 = vsyncpa [#allocation6], 1
    %938 = vsyncpa [#allocation4], 1

</llo_original>
